<compile_context>
chip_gen: v7x
topology: tpu7x:2x2x1
jax: 0.10.0
libtpu: 0.0.40
codegen_flags: <defaults>
</compile_context>

<pallas_src>
import jax
import jax.numpy as jnp
from jax.experimental import pallas as pl
from jax.experimental.pallas import tpu as pltpu


def _pool_fc_kernel(x_ref, mask_ref, w_ref, b_ref, out_ref, acc_ref, den_ref):
    """One (batch-tile, seq-tile) grid step of MeanPooling + fc.

    x_ref:    (TB, TS, H)  activations tile (bf16 preferred, f32 accepted)
    mask_ref: (TB, 1, TS)  attention-mask tile, f32
    w_ref:    (1, H)       fc weight, lane-major f32, resident across the grid
    b_ref:    (1, 1)       fc bias, f32 scalar in SMEM
    out_ref:  (TB, 1)      output tile (leading grid dim squeezed away)
    acc_ref:  (TB, 1)      f32 scratch: running sum_s(mask * (x @ w))
    den_ref:  (TB, 1)      f32 scratch: running sum_s(mask)
    """
    s = pl.program_id(1)

    @pl.when(s == 0)
    def _init():
        acc_ref[...] = jnp.zeros_like(acc_ref)
        den_ref[...] = jnp.zeros_like(den_ref)

    # Masked sum over this sequence tile as one batched MXU contraction.  The
    # 0/1 mask is cast to the activation dtype (exact in bf16) so bf16 tiles go
    # straight into the MXU -- no whole-tile f32 cast, no f32 temporary --
    # while the contraction still accumulates in f32.
    m_f32 = mask_ref[...]                                   # (TB, 1, TS) f32
    m = m_f32.astype(x_ref.dtype)                           # exact for a 0/1 mask
    partial = jnp.einsum("bqs,bsh->bqh", m, x_ref[...],
                         preferred_element_type=jnp.float32)  # (TB, 1, H) f32

    # Project the per-tile masked sum onto the fc weight immediately (fc is
    # linear, so sum-then-project == project-then-sum).  Keeps only two (TB, 1)
    # accumulators resident and keeps the weight product in full f32 (VPU mul +
    # lane reduce; no MXU (H,1) padding waste, no HIGHEST-precision matmul).
    acc_ref[...] += jnp.sum(partial[:, 0, :] * w_ref[...], axis=-1, keepdims=True)
    den_ref[...] += jnp.sum(m_f32, axis=2)                  # (TB, 1)

    @pl.when(s == pl.num_programs(1) - 1)
    def _finalize():
        den = jnp.maximum(den_ref[...], 1e-9)               # clamp, as in the module
        out_ref[...] = (acc_ref[...] / den + b_ref[0, 0]).astype(out_ref.dtype)


def _choose_tiles(B, S, H, itemsize, budget=16 * 1024 * 1024):
    """Pick (TB, TS) with: TB a divisor of B (<= 8) preferring >= 2 batch tiles
    (v7x megacore), TS a divisor of S that is either the full extent or a
    multiple of 128 (layout-legal), and one x block <= ~16 MiB (Pallas
    double-buffers it)."""
    divs = [d for d in range(min(8, B), 0, -1) if B % d == 0]
    tb = next((d for d in divs if B // d >= 2), divs[0])

    def fits(tb_, ts_):
        return tb_ * ts_ * H * itemsize <= budget

    seq_cands = [t for t in (4096, 2048, 1024, 512, 256, 128) if t < S and S % t == 0]

    if fits(tb, S):
        return tb, S
    for t in seq_cands:
        if fits(tb, t):
            return tb, t
    # Budget can't be met at this batch tile: shrink tb rather than exceed it.
    for d in divs:
        if d >= tb:
            continue
        if fits(d, S):
            return d, S
        for t in seq_cands:
            if fits(d, t):
                return d, t
    # Last resort (very large H): smallest layout-legal seq tile, accept overshoot.
    t = next((t for t in (128, 64, 32, 16, 8) if S % t == 0), S)
    return divs[-1], t


def custom_model_head(last_hidden_state, attention_mask, fc_weight, fc_bias):
    """MeanPooling + fc, all compute inside one tiled Pallas kernel.

    last_hidden_state: (B, S, H), bf16 recommended (f32 also accepted)
    attention_mask:    (B, S) int or float
    fc_weight:         (1, H)  (nn.Linear(H, 1).weight)
    fc_bias:           (1,)    (nn.Linear(H, 1).bias)
    returns:           (B, 1) float32
    """
    B, S, H = last_hidden_state.shape
    x = last_hidden_state                                   # keep ingestion dtype
    mask = attention_mask.astype(jnp.float32).reshape(B, 1, S)
    w = jnp.asarray(fc_weight, jnp.float32).reshape(1, H)   # lane-major weight
    b = jnp.asarray(fc_bias, jnp.float32).reshape(1, 1)

    tb, ts = _choose_tiles(B, S, H, x.dtype.itemsize)
    nbt = B // tb
    grid = (nbt, S // ts)

    out = pl.pallas_call(
        _pool_fc_kernel,
        out_shape=jax.ShapeDtypeStruct((nbt, tb, 1), jnp.float32),
        grid_spec=pltpu.PrefetchScalarGridSpec(
            num_scalar_prefetch=0,
            grid=grid,
            in_specs=[
                # activations: tiled over (batch, seq)
                pl.BlockSpec((tb, ts, H), lambda bi, si: (bi, si, 0)),
                # mask: tiled over (batch, seq), pre-shaped (B, 1, S)
                pl.BlockSpec((tb, 1, ts), lambda bi, si: (bi, 0, si)),
                # fc weight: constant index_map -> stays resident, no re-DMA
                pl.BlockSpec((1, H), lambda bi, si: (0, 0)),
                # fc bias: scalar, lives in SMEM
                pl.BlockSpec(memory_space=pltpu.MemorySpace.SMEM),
            ],
            # Output blocked per batch tile; leading (batch-tile) dim squeezed so
            # the block's last two dims are exactly the array's full dims (tb, 1)
            # and any divisor tb of B is layout-legal.
            out_specs=pl.BlockSpec((None, tb, 1), lambda bi, si: (bi, 0, 0)),
            scratch_shapes=[
                pltpu.VMEM((tb, 1), jnp.float32),   # running sum_s(mask * (x@w))
                pltpu.VMEM((tb, 1), jnp.float32),   # running sum_s(mask)
            ],
        ),
        compiler_params=pltpu.CompilerParams(
            dimension_semantics=("parallel", "arbitrary"),
            vmem_limit_bytes=48 * 1024 * 1024,
        ),
    )(x, mask, w, b)

    return out.reshape(B, 1)


if __name__ == "__main__":
    # Small shapes consistent with the module: batch=2, seq=8, hidden=32.
    B, S, H = 2, 8, 32
    initializer_range = 0.02  # typical HF config.initializer_range

    key = jax.random.PRNGKey(0)
    k_x, k_w = jax.random.split(key, 2)

    # Simulated transformer output (stands in for AutoModel(...)[0]), ingested
    # in bf16 so the kernel reads half the HBM bytes.
    last_hidden_state = jax.random.normal(
        k_x, (B, S, H), dtype=jnp.float32).astype(jnp.bfloat16)

    # Attention mask: first sequence fully valid, second half-masked.
    attention_mask = jnp.array(
        [[1] * S, [1] * (S // 2) + [0] * (S - S // 2)], dtype=jnp.int32)

    # fc = nn.Linear(H, 1); _init_weights: weight ~ N(0, initializer_range), bias = 0.
    fc_weight = initializer_range * jax.random.normal(k_w, (1, H), dtype=jnp.float32)
    fc_bias = jnp.zeros((1,), dtype=jnp.float32)

    out = custom_model_head(last_hidden_state, attention_mask, fc_weight, fc_bias)
    out = jax.block_until_ready(out)

    # Pure-JAX reference of the PyTorch module math (same bf16-ingested x).
    x32 = last_hidden_state.astype(jnp.float32)
    m = attention_mask.astype(jnp.float32)[:, :, None]
    sum_emb = jnp.sum(x32 * m, axis=1)
    sum_msk = jnp.maximum(jnp.sum(m, axis=1), 1e-9)
    mean_emb = sum_emb / sum_msk
    ref = jnp.sum(mean_emb * fc_weight, axis=-1, keepdims=True) + fc_bias

    assert out.shape == (B, 1)
    assert jnp.allclose(out, ref, atol=1e-4, rtol=1e-4), (out, ref)

    print("KERNEL_OK")
</pallas_src>

<mosaic_0001>
module attributes {stable_mosaic.version = 11 : i64} {
  func.func @_pool_fc_kernel(%arg0: i32, %arg1: i32, %arg2: memref<1x8x32xbf16, #tpu.memory_space<vmem>>, %arg3: memref<1x1x8xf32, #tpu.memory_space<vmem>>, %arg4: memref<1x32xf32, #tpu.memory_space<vmem>>, %arg5: memref<1x1xf32, #tpu.memory_space<smem>>, %arg6: memref<1x1x1xf32, #tpu.memory_space<vmem>>, %arg7: memref<1x1xf32, #tpu.memory_space<vmem>>, %arg8: memref<1x1xf32, #tpu.memory_space<vmem>>) attributes {dimension_semantics = [#tpu.dimension_semantics<parallel>, #tpu.dimension_semantics<arbitrary>], iteration_bounds = array<i64: 2, 1>, scalar_prefetch = 0 : i64, scratch_operands = 2 : i64, tpu.core_type = #tpu.core_type<tc>, window_params = [{transform_indices = @transform_0, window_bounds = array<i64: 1, 8, 32>}, {transform_indices = @transform_1, window_bounds = array<i64: 1, 1, 8>}, {pipeline_mode = #tpu.pipeline_mode<synchronous>, transform_indices = @transform_2, window_bounds = array<i64: 1, 32>}, {transform_indices = @transform_3, window_bounds = array<i64: 1, 1>}, {transform_indices = @transform_4, window_bounds = array<i64: 1, 1, 1>}]} {
    %c0_i32 = arith.constant 0 : i32
    %0 = arith.cmpi eq, %arg1, %c0_i32 : i32
    %1 = arith.extui %0 : i1 to i32
    %c0_i32_0 = arith.constant 0 : i32
    %2 = arith.cmpi ne, %1, %c0_i32_0 : i32
    scf.if %2 {
      %cst_20 = arith.constant 0.000000e+00 : f32
      %22 = vector.broadcast %cst_20 : f32 to vector<1x1xf32>
      %c0_21 = arith.constant 0 : index
      %c0_22 = arith.constant 0 : index
      %23 = vector.load %arg7[%c0_21, %c0_22] : memref<1x1xf32, #tpu.memory_space<vmem>>, vector<1x1xf32>
      tpu.vector_store %arg7[%c0_21, %c0_22], %22 {strides = array<i32>} : memref<1x1xf32, #tpu.memory_space<vmem>>, vector<1x1xf32>,
      %cst_23 = arith.constant 0.000000e+00 : f32
      %24 = vector.broadcast %cst_23 : f32 to vector<1x1xf32>
      %c0_24 = arith.constant 0 : index
      %c0_25 = arith.constant 0 : index
      %25 = vector.load %arg8[%c0_24, %c0_25] : memref<1x1xf32, #tpu.memory_space<vmem>>, vector<1x1xf32>
      tpu.vector_store %arg8[%c0_24, %c0_25], %24 {strides = array<i32>} : memref<1x1xf32, #tpu.memory_space<vmem>>, vector<1x1xf32>,
    } else {
    }
    %c0 = arith.constant 0 : index
    %c0_1 = arith.constant 0 : index
    %c0_2 = arith.constant 0 : index
    %3 = vector.load %arg3[%c0, %c0_1, %c0_2] : memref<1x1x8xf32, #tpu.memory_space<vmem>>, vector<1x1x8xf32>
    %4 = arith.truncf %3 : vector<1x1x8xf32> to vector<1x1x8xbf16>
    %c0_3 = arith.constant 0 : index
    %c0_4 = arith.constant 0 : index
    %c0_5 = arith.constant 0 : index
    %5 = vector.load %arg2[%c0_3, %c0_4, %c0_5] : memref<1x8x32xbf16, #tpu.memory_space<vmem>>, vector<1x8x32xbf16>
    "tpu.trace_start"() <{level = 10 : i32, message = "bqs,bsh->bqh"}> : () -> ()
    %cst = arith.constant dense<0.000000e+00> : vector<1x1x32xf32>
    %6 = tpu.matmul %4, %5, %cst {dimension_numbers = #tpu.dot_dimension_numbers<[2], [1], [1], [2], [0, 0, 0, 1, 1, 2], [0], [0]>} : vector<1x1x8xbf16>, vector<1x8x32xbf16>, vector<1x1x32xf32> -> vector<1x1x32xf32>
    "tpu.trace_stop"() : () -> ()
    %c0_6 = arith.constant 0 : index
    %c0_7 = arith.constant 0 : index
    %7 = vector.load %arg7[%c0_6, %c0_7] : memref<1x1xf32, #tpu.memory_space<vmem>>, vector<1x1xf32>
    %8 = vector.shape_cast %6 : vector<1x1x32xf32> to vector<1x32xf32>
    %c0_8 = arith.constant 0 : index
    %c0_9 = arith.constant 0 : index
    %9 = vector.load %arg4[%c0_8, %c0_9] : memref<1x32xf32, #tpu.memory_space<vmem>>, vector<1x32xf32>
    %10 = arith.mulf %8, %9 : vector<1x32xf32>
    %cst_10 = arith.constant dense<0.000000e+00> : vector<1xf32>
    %11 = vector.multi_reduction <add>, %10, %cst_10 [1] : vector<1x32xf32> to vector<1xf32>
    %12 = vector.shape_cast %11 : vector<1xf32> to vector<1x1xf32>
    %13 = arith.addf %7, %12 : vector<1x1xf32>
    %c0_11 = arith.constant 0 : index
    %c0_12 = arith.constant 0 : index
    %14 = vector.load %arg7[%c0_11, %c0_12] : memref<1x1xf32, #tpu.memory_space<vmem>>, vector<1x1xf32>
    tpu.vector_store %arg7[%c0_11, %c0_12], %13 {strides = array<i32>} : memref<1x1xf32, #tpu.memory_space<vmem>>, vector<1x1xf32>,
    %c0_13 = arith.constant 0 : index
    %c0_14 = arith.constant 0 : index
    %15 = vector.load %arg8[%c0_13, %c0_14] : memref<1x1xf32, #tpu.memory_space<vmem>>, vector<1x1xf32>
    %cst_15 = arith.constant dense<0.000000e+00> : vector<1x1xf32>
    %16 = vector.multi_reduction <add>, %3, %cst_15 [2] : vector<1x1x8xf32> to vector<1x1xf32>
    %17 = arith.addf %15, %16 : vector<1x1xf32>
    %c0_16 = arith.constant 0 : index
    %c0_17 = arith.constant 0 : index
    %18 = vector.load %arg8[%c0_16, %c0_17] : memref<1x1xf32, #tpu.memory_space<vmem>>, vector<1x1xf32>
    tpu.vector_store %arg8[%c0_16, %c0_17], %17 {strides = array<i32>} : memref<1x1xf32, #tpu.memory_space<vmem>>, vector<1x1xf32>,
    %c0_i32_18 = arith.constant 0 : i32
    %19 = arith.cmpi eq, %arg1, %c0_i32_18 : i32
    %20 = arith.extui %19 : i1 to i32
    %c0_i32_19 = arith.constant 0 : i32
    %21 = arith.cmpi ne, %20, %c0_i32_19 : i32
    scf.if %21 {
      %c0_20 = arith.constant 0 : index
      %c0_21 = arith.constant 0 : index
      %22 = vector.load %arg8[%c0_20, %c0_21] : memref<1x1xf32, #tpu.memory_space<vmem>>, vector<1x1xf32>
      %cst_22 = arith.constant 9.99999971E-10 : f32
      %23 = vector.broadcast %cst_22 : f32 to vector<1x1xf32>
      %24 = arith.maximumf %22, %23 : vector<1x1xf32>
      %c0_23 = arith.constant 0 : index
      %c0_24 = arith.constant 0 : index
      %25 = vector.load %arg7[%c0_23, %c0_24] : memref<1x1xf32, #tpu.memory_space<vmem>>, vector<1x1xf32>
      %26 = arith.divf %25, %24 : vector<1x1xf32>
      %c0_25 = arith.constant 0 : index
      %c0_26 = arith.constant 0 : index
      %27 = memref.load %arg5[%c0_25, %c0_26] : memref<1x1xf32, #tpu.memory_space<smem>>
      %28 = vector.broadcast %27 : f32 to vector<1x1xf32>
      %29 = arith.addf %26, %28 : vector<1x1xf32>
      %c0_27 = arith.constant 0 : index
      %c0_28 = arith.constant 0 : index
      %c0_29 = arith.constant 0 : index
      %30 = vector.load %arg6[%c0_27, %c0_28, %c0_29] : memref<1x1x1xf32, #tpu.memory_space<vmem>>, vector<1x1x1xf32>
      %31 = vector.shape_cast %30 : vector<1x1x1xf32> to vector<1x1xf32>
      %32 = vector.shape_cast %29 : vector<1x1xf32> to vector<1x1x1xf32>
      tpu.vector_store %arg6[%c0_27, %c0_28, %c0_29], %32 {strides = array<i32>} : memref<1x1x1xf32, #tpu.memory_space<vmem>>, vector<1x1x1xf32>,
    } else {
    }
    return
  }
  func.func @transform_0(%arg0: i32, %arg1: i32) -> (i32, i32, i32) {
    %c0_i32 = arith.constant 0 : i32
    %c0_i32_0 = arith.constant 0 : i32
    return %arg0, %arg1, %c0_i32 : i32, i32, i32
  }
  func.func @transform_1(%arg0: i32, %arg1: i32) -> (i32, i32, i32) {
    %c0_i32 = arith.constant 0 : i32
    %c0_i32_0 = arith.constant 0 : i32
    return %arg0, %c0_i32, %arg1 : i32, i32, i32
  }
  func.func @transform_2(%arg0: i32, %arg1: i32) -> (i32, i32) {
    %c0_i32 = arith.constant 0 : i32
    %c0_i32_0 = arith.constant 0 : i32
    %c0_i32_1 = arith.constant 0 : i32
    return %c0_i32, %c0_i32_0 : i32, i32
  }
  func.func @transform_3(%arg0: i32, %arg1: i32) -> (i32, i32) {
    %c0_i32 = arith.constant 0 : i32
    %c0_i32_0 = arith.constant 0 : i32
    %c0_i32_1 = arith.constant 0 : i32
    return %c0_i32, %c0_i32_0 : i32, i32
  }
  func.func @transform_4(%arg0: i32, %arg1: i32) -> (i32, i32, i32) {
    %c0_i32 = arith.constant 0 : i32
    %c0_i32_0 = arith.constant 0 : i32
    %c0_i32_1 = arith.constant 0 : i32
    return %arg0, %c0_i32, %c0_i32_0 : i32, i32, i32
  }
}

</mosaic_0001>

<llo_original>
// kernel: tpu_custom_call.1
$region0: #{tpu_custom_call.1}
  #allocation0 [shape = 'u32[]', space=smem, size = 0x4, offset = 0x4, fixed_abs, tag = 'smem constant byte address 0x4 - core index']
  #allocation1 [shape = 'u32[144,128]{1,0:T(1,128)}', space=vmem, size = 0x12000, scoped, tag = 'internal scratch']
  #allocation2 [shape = 'f32[1,1]{1,0:T(1,128)}', space=vmem, size = 0x200, scoped, tag = 'scratch operand']
  #allocation3 [shape = 'f32[1,1]{1,0:T(1,128)}', space=vmem, size = 0x200, scoped, tag = 'scratch operand']
  #allocation4 [shape = 'f32[1,1]{1,0:T(1,128)S(6)}', space=smem, size = 0x200, scoped, tag = 'scoped memory for tpu_custom_call.1']
  %s0 = inlined_call_operand.hbm [shape: bf16[2,8,32], index: 0, kind: input, shape index: {}]
  %s1 = inlined_call_operand.vmem [shape: f32[2,1,8], index: 1, kind: input, shape index: {}]
  %s2 = inlined_call_operand.vmem [shape: f32[1,32], index: 2, kind: input, shape index: {}]
  %s3 = inlined_call_operand.<no memory space> [shape: f32[1,1], index: 3, kind: input, shape index: {}]
  %s4 = inlined_call_operand.vmem [shape: f32[2,1,1], index: 4, kind: output, shape index: {}]
  %s5 = sld [smem:[#allocation0]]
  $region61: #{tpu_custom_call.1} parent=0
    _
  %s7 = ssub.s32 1, %s5
  %s8 = scalar_select 0, %s7, %s5
  %9 = sst [smem:[#allocation4]] %s3
  $region1: #{tpu_custom_call.1} parent=0
    #allocation5 [shape = 'u8[4096]{0}', space=vmem, size = 0x1000, scoped, tag = 'input window, operand 0']
    #allocation6 [shape = 's32[2]{0}', space=sflag, size = 0x8, scoped, tag = 'scoped memory for tpu_custom_call.1']
    %10 = vsyncpa [#allocation6], 0
    %s11 = scalar_lea.sflag [#allocation6], 1
    %12 = vsyncpa %s11, 0
    loop: start=0, step=1, limit=4
    $region2: #{tpu_custom_call.1} parent=1 // loop_pre_header
      _
    $region3: #{tpu_custom_call.1} parent=1 // loop_header
      %s14 = sphi 0, %s18
      %p15 = scmp.ge.s32.totalorder %s14, 4
      %s21 = sphi 0, %s33
      %s22 = sphi 0, %s29
      %s23 = sphi 0, %s21
      %s24 = sphi 0, %s22
      %s25 = sphi 0, %s23
      %s26 = sphi 0, %s24
      %s38 = sphi 0, %s40
      %s41 = sphi 0, %s38
      %s42 = sphi 0, %s41
      %s58 = sphi 0, %s42
      %s66 = sphi 0, %s68
      %s69 = sphi 0, %s66
      %s70 = sphi 0, %s69
      %s86 = sphi 0, %s70
      %s90 = sphi 0, %s90
      %s92 = sphi 0, %s90
      %s93 = sphi 0, %s92
      %s107 = sphi 0, %s93
      %s111 = sphi 0, %s111
      %s113 = sphi 0, %s111
      %s114 = sphi 0, %s113
      %s128 = sphi 0, %s114
      %s134 = sphi 0, %s136
      %s137 = sphi 0, %s134
      %s138 = sphi 0, %s137
      %s154 = sphi 0, %s138
    $region4: #{tpu_custom_call.1} parent=1 // loop_header_branch
      %17 = sbr.rel (%p15) target = $region8
    $region5: #{tpu_custom_call.1} parent=1 // loop_body
      %s19 = ssub.s32 %s14, 1
      %s20 = ssub.s32 %s14, 2
      %s27 = sadd.s32 1, %s22
      %p28 = scmp.ge.s32.totalorder %s27, 1
      %s29 = scalar_select %p28, 0, %s27
      %s30 = sadd.s32 1, %s21
      %s31 = scalar_select %p28, %s30, %s21
      %p32 = scmp.ge.s32.totalorder %s31, 2
      %s33 = scalar_select %p32, 0, %s31
      %s34 = ssub.s32 %s21, %s33
      %s35 = ssub.s32 %s22, %s29
      %s36 = sor.u32 %s34, %s35
      %p37 = scmp.eq.s32.totalorder %s36, 0
      %s39 = sadd.s32 %s38, 1
      %s40 = scalar_select %p37, %s38, %s39
      %p43 = pneg %p37
      %p44 = scmp.eq.s32.totalorder %s14, 1
      %p45 = por %p43, %p44
      %p46 = scmp.ne.s32.totalorder %s38, %s41
      %p47 = scmp.eq.s32.totalorder %s14, 0
      %p48 = por %p46, %p47
      %p49 = scmp.ne.s32.totalorder %s38, %s41
      %p50 = scmp.eq.s32.totalorder %s19, 1
      %p51 = por %p49, %p50
      %p52 = scmp.ne.s32.totalorder %s41, %s42
      %p53 = scmp.eq.s32.totalorder %s19, 0
      %p54 = por %p52, %p53
      %p55 = scmp.ne.s32.totalorder %s41, %s42
      %p56 = scmp.eq.s32.totalorder %s20, 1
      %p57 = por %p55, %p56
      %p59 = scmp.ne.s32.totalorder %s42, %s58
      %p60 = scmp.eq.s32.totalorder %s20, 0
      %p61 = por %p59, %p60
      %s62 = ssub.s32 %s21, %s33
      %s63 = ssub.s32 %s22, %s29
      %s64 = sor.u32 %s62, %s63
      %p65 = scmp.eq.s32.totalorder %s64, 0
      %s67 = sadd.s32 %s66, 1
      %s68 = scalar_select %p65, %s66, %s67
      %p71 = pneg %p65
      %p72 = scmp.eq.s32.totalorder %s14, 1
      %p73 = por %p71, %p72
      %p74 = scmp.ne.s32.totalorder %s66, %s69
      %p75 = scmp.eq.s32.totalorder %s14, 0
      %p76 = por %p74, %p75
      %p77 = scmp.ne.s32.totalorder %s66, %s69
      %p78 = scmp.eq.s32.totalorder %s19, 1
      %p79 = por %p77, %p78
      %p80 = scmp.ne.s32.totalorder %s69, %s70
      %p81 = scmp.eq.s32.totalorder %s19, 0
      %p82 = por %p80, %p81
      %p83 = scmp.ne.s32.totalorder %s69, %s70
      %p84 = scmp.eq.s32.totalorder %s20, 1
      %p85 = por %p83, %p84
      %p87 = scmp.ne.s32.totalorder %s70, %s86
      %p88 = scmp.eq.s32.totalorder %s20, 0
      %p89 = por %p87, %p88
      %s91 = sadd.s32 %s90, 1
      %p94 = scmp.eq.s32.totalorder %s14, 1
      %p95 = scmp.ne.s32.totalorder %s90, %s92
      %p96 = scmp.eq.s32.totalorder %s14, 0
      %p97 = por %p95, %p96
      %p98 = scmp.ne.s32.totalorder %s90, %s92
      %p99 = scmp.eq.s32.totalorder %s19, 1
      %p100 = por %p98, %p99
      %p101 = scmp.ne.s32.totalorder %s92, %s93
      %p102 = scmp.eq.s32.totalorder %s19, 0
      %p103 = por %p101, %p102
      %p104 = scmp.ne.s32.totalorder %s92, %s93
      %p105 = scmp.eq.s32.totalorder %s20, 1
      %p106 = por %p104, %p105
      %p108 = scmp.ne.s32.totalorder %s93, %s107
      %p109 = scmp.eq.s32.totalorder %s20, 0
      %p110 = por %p108, %p109
      %s112 = sadd.s32 %s111, 1
      %p115 = scmp.eq.s32.totalorder %s14, 1
      %p116 = scmp.ne.s32.totalorder %s111, %s113
      %p117 = scmp.eq.s32.totalorder %s14, 0
      %p118 = por %p116, %p117
      %p119 = scmp.ne.s32.totalorder %s111, %s113
      %p120 = scmp.eq.s32.totalorder %s19, 1
      %p121 = por %p119, %p120
      %p122 = scmp.ne.s32.totalorder %s113, %s114
      %p123 = scmp.eq.s32.totalorder %s19, 0
      %p124 = por %p122, %p123
      %p125 = scmp.ne.s32.totalorder %s113, %s114
      %p126 = scmp.eq.s32.totalorder %s20, 1
      %p127 = por %p125, %p126
      %p129 = scmp.ne.s32.totalorder %s114, %s128
      %p130 = scmp.eq.s32.totalorder %s20, 0
      %p131 = por %p129, %p130
      %s132 = ssub.s32 %s21, %s33
      %p133 = scmp.eq.s32.totalorder %s132, 0
      %s135 = sadd.s32 %s134, 1
      %s136 = scalar_select %p133, %s134, %s135
      %p139 = pneg %p133
      %p140 = scmp.eq.s32.totalorder %s14, 1
      %p141 = por %p139, %p140
      %p142 = scmp.ne.s32.totalorder %s134, %s137
      %p143 = scmp.eq.s32.totalorder %s14, 0
      %p144 = por %p142, %p143
      %p145 = scmp.ne.s32.totalorder %s134, %s137
      %p146 = scmp.eq.s32.totalorder %s19, 1
      %p147 = por %p145, %p146
      %p148 = scmp.ne.s32.totalorder %s137, %s138
      %p149 = scmp.eq.s32.totalorder %s19, 0
      %p150 = por %p148, %p149
      %p151 = scmp.ne.s32.totalorder %s137, %s138
      %p152 = scmp.eq.s32.totalorder %s20, 1
      %p153 = por %p151, %p152
      %p155 = scmp.ne.s32.totalorder %s138, %s154
      %p156 = scmp.eq.s32.totalorder %s20, 0
      %p157 = por %p155, %p156
      %p158 = scmp.le.s32.totalorder 1, %s14
      %p159 = scmp.lt.s32.totalorder %s14, 3
      %p160 = pnand %p158, %p159
      %p161 = pneg %p160
      // Predicated region
      $region9: #{tpu_custom_call.1} parent=5 // pred_check
        _
      $region10: #{tpu_custom_call.1} parent=5 // pred_check_branch
        %163 = sbr.rel (%p160) target = $region12
      $region11: #{tpu_custom_call.1} parent=5 // pred_region
        %s164 = ssub.s32 %s14, 1
        // Predicated region
        $region13: #{tpu_custom_call.1} parent=11 // pred_check
          %p165 = pneg %p103
        $region14: #{tpu_custom_call.1} parent=11 // pred_check_branch
          %167 = sbr.rel (%p165) target = $region16
        $region15: #{tpu_custom_call.1} parent=11 // pred_region
          _
        $region16: #{tpu_custom_call.1} parent=11 // pred_fallthru
          _
        // Predicated region
        $region17: #{tpu_custom_call.1} parent=11 // pred_check
          %p168 = pneg %p124
        $region18: #{tpu_custom_call.1} parent=11 // pred_check_branch
          %170 = sbr.rel (%p168) target = $region20
        $region19: #{tpu_custom_call.1} parent=11 // pred_region
          _
        $region20: #{tpu_custom_call.1} parent=11 // pred_fallthru
          _
      $region12: #{tpu_custom_call.1} parent=5 // pred_fallthru
        _
      %p171 = scmp.lt.s32.totalorder %s14, 2
      // Predicated region
      $region21: #{tpu_custom_call.1} parent=5 // pred_check
        %p172 = pneg %p171
      $region22: #{tpu_custom_call.1} parent=5 // pred_check_branch
        %174 = sbr.rel (%p172) target = $region24
      $region23: #{tpu_custom_call.1} parent=5 // pred_region
        // Predicated region
        $region25: #{tpu_custom_call.1} parent=23 // pred_check
          %p175 = pneg %p48
        $region26: #{tpu_custom_call.1} parent=23 // pred_check_branch
          %177 = sbr.rel (%p175) target = $region28
        $region27: #{tpu_custom_call.1} parent=23 // pred_region
          %s178 = sand.u32 %s38, 1
          %s179 = scalar_lea.sflag [#allocation6], %s178
          %s180 = sand.u32 %s38, 1
          %s181 = smul.addr %s180, 4
          %s182 = scalar_lea.vmem [#allocation5], %s181
          %s184 = ssub.s32 64, 64
          %185 = vsyncadd %s179, %s184
          %s186 = sadd.s32 %s22, %s21
          %s187 = smul.addr %s186, 64
          %s188 = scalar_lea.hbm %s0, %s187
          %s190 = sshll.u32 %s182, 4
          %s191 = int_to_ptr.vmem [resolvable:$true] %s190
          %193 = dma.hbm_to_vmem [thread:$0]  %s188, 64, %s191, %s179
        $region28: #{tpu_custom_call.1} parent=23 // pred_fallthru
          _
        // Predicated region
        $region29: #{tpu_custom_call.1} parent=23 // pred_check
          %p194 = pneg %p76
        $region30: #{tpu_custom_call.1} parent=23 // pred_check_branch
          %196 = sbr.rel (%p194) target = $region32
        $region31: #{tpu_custom_call.1} parent=23 // pred_region
          %p197 = scmp.lt.s32.totalorder %s21, 1
          %s198 = scalar_select %p197, %s21, 1
          %p199 = scmp.lt.s32.totalorder %s22, 0
          %s200 = scalar_select %p199, %s22, 0
          %s201 = sadd.s32 %s200, %s198
          %s202 = scalar_lea.vmem %s1, %s201
        $region32: #{tpu_custom_call.1} parent=23 // pred_fallthru
          _
      $region24: #{tpu_custom_call.1} parent=5 // pred_fallthru
        _
      %p203 = scmp.le.s32.totalorder 1, %s14
      %p204 = scmp.lt.s32.totalorder %s14, 3
      %p205 = pnand %p203, %p204
      %p206 = pneg %p205
      // Predicated region
      $region33: #{tpu_custom_call.1} parent=5 // pred_check
        _
      $region34: #{tpu_custom_call.1} parent=5 // pred_check_branch
        %208 = sbr.rel (%p205) target = $region36
      $region35: #{tpu_custom_call.1} parent=5 // pred_region
        %s209 = ssub.s32 %s14, 1
        %s210 = sand.u32 %s41, 1
        %s211 = scalar_lea.sflag [#allocation6], %s210
        %s212 = sand.u32 %s41, 1
        %s213 = smul.addr %s212, 4
        %s214 = scalar_lea.vmem [#allocation5], %s213
        // Predicated region
        $region37: #{tpu_custom_call.1} parent=35 // pred_check
          %p215 = pneg %p54
        $region38: #{tpu_custom_call.1} parent=35 // pred_check_branch
          %217 = sbr.rel (%p215) target = $region40
        $region39: #{tpu_custom_call.1} parent=35 // pred_region
          %218 = dma.done %s211, 64
        $region40: #{tpu_custom_call.1} parent=35 // pred_fallthru
          _
        %s219 = sand.u32 %s41, 1
        %s220 = scalar_lea.sflag [#allocation6], %s219
        %s221 = sand.u32 %s41, 1
        %s222 = smul.addr %s221, 4
        %s223 = scalar_lea.vmem [#allocation5], %s222
        %p224 = pneg %p54
        %p225 = pneg %p51
        %p226 = scmp.lt.s32.totalorder %s23, 1
        %s227 = scalar_select %p226, %s23, 1
        %p228 = scmp.lt.s32.totalorder %s24, 0
        %s229 = scalar_select %p228, %s24, 0
        %s230 = sadd.s32 %s229, %s227
        %s231 = scalar_lea.vmem %s1, %s230
        %p232 = pneg %p82
        %p233 = pneg %p79
        %p234 = pneg %p103
        %p235 = pneg %p100
        %p236 = pneg %p124
        %p237 = pneg %p121
        %p238 = pneg %p150
        %p239 = pneg %p147
        %p240 = scmp.lt.s32.totalorder %s23, 1
        %s241 = scalar_select %p240, %s23, 1
        %s242 = scalar_lea.vmem %s4, %s241
        %p243 = scmp.lt.s32.totalorder %s23, 1
        %s244 = scalar_select %p243, %s23, 1
        %p245 = scmp.lt.s32.totalorder %s24, 0
        %s246 = scalar_select %p245, %s24, 0
        %s247 = sadd.s32 %s246, %s244
        %s248 = scalar_lea.vmem %s1, %s247
        %p249 = scmp.lt.s32.totalorder %s23, 1
        %s250 = scalar_select %p249, %s23, 1
        %s251 = scalar_lea.vmem %s4, %s250
        %p253 = scmp.eq.s32.totalorder %s24, 0
        // Predicated region
        $region41: #{tpu_custom_call.1} parent=35 // pred_check
          %p254 = pneg %p253
        $region42: #{tpu_custom_call.1} parent=35 // pred_check_branch
          %256 = sbr.rel (%p254) target = $region44
        $region43: #{tpu_custom_call.1} parent=35 // pred_region
          %vm257 = vcmask 0
          %258 = vst.msk [vmem:[#allocation2] sm:$0x1] %vm257, 0.0
          %259 = vst.msk [vmem:[#allocation3] sm:$0x1] %vm257, 0.0
        $region44: #{tpu_custom_call.1} parent=35 // pred_fallthru
          _
        %v260 = vld [vmem:[%s248] sm:$0x1]
        %v261 = vpack.c.bf16 %v260, %v260
        %v262 = vld [vmem:[%s214] sm:$0xf]
        %vm263 = vcmask 64512
        %v265 = vsel %vm263, %v261, 0
        %vm267 = vcmask 1043456
        %v269 = vsel %vm267, %v262, 0
        %271 = vmatprep.subr.bf16.mxu0 0
        %272 = vmatpush1.bf16.msra.mxu0 %v269
        %273 = vmatprep.subr.bf16.mxu0 0
        %274 = vmatpush1.bf16.msra.mxu0 0
        %275 = vmatprep.subr.bf16.mxu0 0
        %276 = vmatpush1.bf16.msra.mxu0 0
        %277 = vmatprep.subr.bf16.mxu0 0
        %278 = vmatpush1.bf16.msra.mxu0 0
        %279 = vmatprep.subr.bf16.mxu0 0
        %280 = vmatpush1.bf16.msra.mxu0 0
        %281 = vmatprep.subr.bf16.mxu0 0
        %282 = vmatpush1.bf16.msra.mxu0 0
        %283 = vmatprep.subr.bf16.mxu0 0
        %284 = vmatpush1.bf16.msra.mxu0 0
        %285 = vmatprep.subr.bf16.mxu0 0
        %286 = vmatpush1.bf16.msra.mxu0 0
        %287 = vmatprep.subr.bf16.mxu0 0
        %288 = vmatpush1.bf16.msra.mxu0 0
        %289 = vmatprep.subr.bf16.mxu0 0
        %290 = vmatpush1.bf16.msra.mxu0 0
        %291 = vmatprep.subr.bf16.mxu0 0
        %292 = vmatpush1.bf16.msra.mxu0 0
        %293 = vmatprep.subr.bf16.mxu0 0
        %294 = vmatpush1.bf16.msra.mxu0 0
        %295 = vmatprep.subr.bf16.mxu0 0
        %296 = vmatpush1.bf16.msra.mxu0 0
        %297 = vmatprep.subr.bf16.mxu0 0
        %298 = vmatpush1.bf16.msra.mxu0 0
        %299 = vmatprep.subr.bf16.mxu0 0
        %300 = vmatpush1.bf16.msra.mxu0 0
        %301 = vmatprep.subr.bf16.mxu0 0
        %302 = vmatpush1.bf16.msra.mxu0 0
        %303 = vmatprep.mubr.bf16.mxu0 0
        %304 = vmatmul.mubr.bf16.gmra.mrb[0].mxu0 %v265
        %v305 = vpop.f32.mrb[0].mxu0
        %v306 = vadd.f32 0.0, %v305
        %v307 = vpop.f32.mrb[0].mxu0
        %v308 = vpop.f32.mrb[0].mxu0
        %v309 = vpop.f32.mrb[0].mxu0
        %310 = vdwg.mxu0
        %v311 = vld [vmem:[#allocation2] sm:$0x1]
        %v312 = vld [vmem:[%s2] sm:$0x1]
        %v313 = vmul.f32 %v306, %v312
        %vm314 = vcmask 253952
        %v315 = vsel %vm314, %v313, 0.0
        %316 = vadd.xlane.f32.xlu0 %v315
        %v317 = vpop.xlane.xlu0 %316
        %v318 = vadd.f32 %v311, %v317
        %vm319 = vcmask 0
        %320 = vst.msk [vmem:[#allocation2] sm:$0x1] %vm319, %v318
        %v321 = vld [vmem:[#allocation3] sm:$0x1]
        %vm322 = vcmask 57344
        %v323 = vsel %vm322, %v260, 0.0
        %324 = vadd.xlane.f32.xlu0 %v323
        %v325 = vpop.xlane.xlu0 %324
        %v326 = vadd.f32 %v321, %v325
        %327 = vst.msk [vmem:[#allocation3] sm:$0x1] %vm319, %v326
        // Predicated region
        $region45: #{tpu_custom_call.1} parent=35 // pred_check
          %p328 = pneg %p253
        $region46: #{tpu_custom_call.1} parent=35 // pred_check_branch
          %330 = sbr.rel (%p328) target = $region48
        $region47: #{tpu_custom_call.1} parent=35 // pred_region
          %v331 = vld [vmem:[#allocation3] sm:$0x1]
          %v332 = vmax.f32 %v331, 1e-09
          %v333 = vld [vmem:[#allocation2] sm:$0x1]
          %v334 = vrcp.pop %v332
          %v335 = vmul.f32 %v333, %v334
          %s336 = sld [smem:[#allocation4]]
          %v337 = vstv %s336
          %v338 = vadd.f32 %v335, %v337
          %339 = vst.msk [vmem:[%s251] sm:$0x1] %vm319, %v338
        $region48: #{tpu_custom_call.1} parent=35 // pred_fallthru
          _
        %p340 = scmp.lt.s32.totalorder %s23, 1
        %s341 = scalar_select %p340, %s23, 1
        %s342 = scalar_lea.vmem %s4, %s341
        // Predicated region
        $region49: #{tpu_custom_call.1} parent=35 // pred_check
          %p343 = pneg %p147
        $region50: #{tpu_custom_call.1} parent=35 // pred_check_branch
          %345 = sbr.rel (%p343) target = $region52
        $region51: #{tpu_custom_call.1} parent=35 // pred_region
          _
        $region52: #{tpu_custom_call.1} parent=35 // pred_fallthru
          _
      $region36: #{tpu_custom_call.1} parent=5 // pred_fallthru
        _
      %p346 = scmp.le.s32.totalorder 2, %s14
      // Predicated region
      $region53: #{tpu_custom_call.1} parent=5 // pred_check
        %p347 = pneg %p346
      $region54: #{tpu_custom_call.1} parent=5 // pred_check_branch
        %349 = sbr.rel (%p347) target = $region56
      $region55: #{tpu_custom_call.1} parent=5 // pred_region
        %s350 = ssub.s32 %s14, 2
        // Predicated region
        $region57: #{tpu_custom_call.1} parent=55 // pred_check
          %p351 = pneg %p153
        $region58: #{tpu_custom_call.1} parent=55 // pred_check_branch
          %353 = sbr.rel (%p351) target = $region60
        $region59: #{tpu_custom_call.1} parent=55 // pred_region
          %p354 = scmp.lt.s32.totalorder %s25, 1
          %s355 = scalar_select %p354, %s25, 1
          %s356 = scalar_lea.vmem %s4, %s355
        $region60: #{tpu_custom_call.1} parent=55 // pred_fallthru
          _
      $region56: #{tpu_custom_call.1} parent=5 // pred_fallthru
        _
    $region6: #{tpu_custom_call.1} parent=1 // loop_footer
      %s18 = sadd.s32 1, %s14
    $region7: #{tpu_custom_call.1} parent=1 // loop_footer_branch
      %13 = sbr.rel target = $region3
    $region8: #{tpu_custom_call.1} parent=1 // loop_exit
      _
    %357 = vsyncpa [#allocation6], 1
    %s358 = scalar_lea.sflag [#allocation6], 1
    %359 = vsyncpa %s358, 1

</llo_original>
